<compile_context>
chip_gen: v7x
topology: tpu7x:2x2x1
jax: 0.10.0
libtpu: 0.0.40
codegen_flags: <defaults>
</compile_context>

<pallas_src>
import math

import jax
import jax.numpy as jnp
from jax import lax
from jax.experimental import pallas as pl
from jax.experimental.pallas import tpu as pltpu

N = 16            # number of nodes
C_IN = 16         # input feature dim
C_OUT = 32        # output feature dim (= heads * per-head dim)
HEADS = 4
HEAD_DIM = C_OUT // HEADS
POOL_RATIO = 0.5
K = int(math.ceil(POOL_RATIO * N))   # nodes kept by TopKPooling
NEG_SLOPE = 0.2   # LeakyReLU slope (GAT attention and the block activation)
LN_EPS = 1e-5
NEG_INF = -1e30
PAD = 8           # per-head logit blocks inside w_full are padded to 8 lanes


def _leaky(v):
    return jnp.where(v > 0, v, NEG_SLOPE * v)


def encoder_block_kernel(x_ref, w_ref, pvec_ref, edge_ref,
                         xout_ref, eidx_ref, perm_ref, score_ref):
    n = x_ref.shape[0]
    e_cnt = edge_ref.shape[1]
    k = xout_ref.shape[0]

    x = x_ref[...]                 # (N, C_IN)
    w = w_ref[...]                 # (C_IN, C_OUT + 2*PAD)
    pvec = pvec_ref[...]           # (4, C_OUT): bias, gamma, beta, pool_w/||pool_w||
    ei = edge_ref[...]             # (2, E) int32, rows = (src, dst)

    # ---- dense adjacency (with self-loops) built in-kernel from edge_index ----
    node_ids = lax.broadcasted_iota(jnp.int32, (n, e_cnt), 0)
    src_oh = (node_ids == ei[0:1, :]).astype(jnp.float32)      # (N, E)
    dst_oh = (node_ids == ei[1:2, :]).astype(jnp.float32)      # (N, E)
    adj_cnt = lax.dot_general(dst_oh, src_oh, (((1,), (1,)), ((), ())),
                              preferred_element_type=jnp.float32)   # (N, N)
    row_i = lax.broadcasted_iota(jnp.int32, (n, n), 0)
    col_j = lax.broadcasted_iota(jnp.int32, (n, n), 1)
    eye = (row_i == col_j).astype(jnp.float32)
    # TODO(synk): duplicate edges collapse to a single softmax term (PyG would
    # count each duplicate separately); fine for simple graphs.
    adj_mask = (adj_cnt + eye) > 0.0
    neg_mask = jnp.where(adj_mask, 0.0, NEG_INF)               # additive mask

    # ---- fused projection: node features + per-head src/dst logits -----------
    h_ext = jnp.dot(x, w, preferred_element_type=jnp.float32)  # (N, C_OUT + 16)
    h = h_ext[:, :C_OUT]                                       # (N, C_OUT)
    a_dst = h_ext[:, C_OUT:C_OUT + PAD]                        # (N, 8), heads in cols 0:4
    a_src = h_ext[:, C_OUT + PAD:C_OUT + 2 * PAD]              # (N, 8)
    src_t = jnp.transpose(a_src)                               # (8, N) one tiny transpose

    # ---- stacked-head attention: single softmax pass over (HEADS*N, N) -------
    e_stk = jnp.concatenate(
        [a_dst[:, hd:hd + 1] + src_t[hd:hd + 1, :] for hd in range(HEADS)],
        axis=0)                                                # (HEADS*N, N)
    mask_stk = jnp.concatenate([neg_mask] * HEADS, axis=0)     # (HEADS*N, N)
    e_stk = _leaky(e_stk) + mask_stk
    m = jnp.max(e_stk, axis=-1, keepdims=True)
    p = jnp.exp(e_stk - m)
    attn = p / jnp.sum(p, axis=-1, keepdims=True)              # exact divide (parity)
    # attention dropout: identity in eval mode

    # ---- one MXU aggregation matmul; pick per-head diagonal blocks -----------
    agg = jnp.dot(attn, h, preferred_element_type=jnp.float32)  # (HEADS*N, C_OUT)
    out = jnp.concatenate(
        [agg[hd * n:(hd + 1) * n, hd * HEAD_DIM:(hd + 1) * HEAD_DIM]
         for hd in range(HEADS)], axis=1)                        # (N, C_OUT)
    out = out + pvec[0:1, :]                                     # GAT bias

    # ---- LayerNorm + LeakyReLU (block dropout: identity in eval mode) --------
    mu = jnp.mean(out, axis=-1, keepdims=True)
    var = jnp.mean((out - mu) ** 2, axis=-1, keepdims=True)
    y = (out - mu) * lax.rsqrt(var + LN_EPS)
    y = y * pvec[1:2, :] + pvec[2:3, :]                          # gamma, beta
    y = _leaky(y)                                                # (N, C_OUT)

    # ---- TopKPooling fused in-kernel ------------------------------------------
    pw = pvec[3:4, :]                                            # pre-normalized weight
    s_row = jnp.tanh(lax.dot_general(pw, y, (((1,), (1,)), ((), ())),
                                     preferred_element_type=jnp.float32))  # (1, N)

    # rank[j] = #nodes ordered before j (descending score, ties -> lower index)
    s_j = jnp.broadcast_to(s_row, (n, n))        # [i, j] = s[j]
    s_i = jnp.transpose(s_j)                     # [i, j] = s[i]
    before = (s_i > s_j) | ((s_i == s_j) & (row_i < col_j))      # node i before node j
    rank_row = jnp.sum(before.astype(jnp.float32), axis=0, keepdims=True)   # (1, N)
    kept_row = (rank_row < float(k)).astype(jnp.float32)                     # (1, N)

    # one-hot selection matrix sel[r, j] = (rank[j] == r), r < k
    r_iota = lax.broadcasted_iota(jnp.int32, (k, n), 0).astype(jnp.float32)
    sel = (jnp.broadcast_to(rank_row, (k, n)) == r_iota).astype(jnp.float32)  # (k, N)

    # x[perm]*score[perm], score[perm] and perm produced with one matmul
    s_col = s_i[:, 0:1]                                           # (N, 1) = s[i]
    idx_col = row_i[:, 0:1].astype(jnp.float32)                   # (N, 1) = i
    rhs = jnp.concatenate([y * s_col, s_col, idx_col], axis=1)    # (N, C_OUT + 2)
    gathered = jnp.dot(sel, rhs, preferred_element_type=jnp.float32)  # (k, C_OUT + 2)
    xout_ref[...] = gathered[:, :C_OUT]
    score_ref[...] = gathered[:, C_OUT:C_OUT + 1]
    perm_ref[...] = gathered[:, C_OUT + 1:C_OUT + 2].astype(jnp.int32)

    # edge remap to kept-node ids; edges touching dropped nodes -> -1
    # TODO(synk): PyG compacts edge_index to the surviving edges (dynamic size);
    # JAX needs static shapes, so dropped edges are padded with -1 instead.
    remap = jnp.concatenate([rank_row, kept_row], axis=0)         # (2, N)
    oh_both = jnp.concatenate([src_oh, dst_oh], axis=1)           # (N, 2E)
    mapped = jnp.dot(remap, oh_both, preferred_element_type=jnp.float32)  # (2, 2E)
    rank_src = mapped[0:1, :e_cnt]
    rank_dst = mapped[0:1, e_cnt:]
    valid = (mapped[1:2, :e_cnt] > 0.5) & (mapped[1:2, e_cnt:] > 0.5)
    new_src = jnp.where(valid, rank_src, -1.0)
    new_dst = jnp.where(valid, rank_dst, -1.0)
    eidx_ref[...] = jnp.concatenate([new_src, new_dst], axis=0).astype(jnp.int32)


def pack_params(params):
    """One-time (init-time) parameter preprocessing / packing."""
    lin_w = params["lin_w"].astype(jnp.float32)        # (C_IN, C_OUT)
    att_src = params["att_src"].astype(jnp.float32)[0]  # (C_OUT,)
    att_dst = params["att_dst"].astype(jnp.float32)[0]  # (C_OUT,)

    # per-head selector: sel[c, hd] = 1 if channel c belongs to head hd
    head_of_c = jnp.arange(C_OUT) // HEAD_DIM
    sel = (head_of_c[:, None] == jnp.arange(HEADS)[None, :]).astype(jnp.float32)
    w_dst = lin_w @ (sel * att_dst[:, None])            # (C_IN, HEADS)
    w_src = lin_w @ (sel * att_src[:, None])            # (C_IN, HEADS)
    pad = jnp.zeros((C_IN, PAD - HEADS), jnp.float32)   # align blocks to 8 lanes
    w_full = jnp.concatenate([lin_w, w_dst, pad, w_src, pad], axis=1)  # (C_IN, C_OUT+16)

    pw = params["pool_w"].astype(jnp.float32)            # (1, C_OUT)
    pw = pw * lax.rsqrt(jnp.sum(pw * pw))                # pre-normalize (TopKPooling)

    pvec = jnp.concatenate([params["bias"], params["ln_gamma"],
                            params["ln_beta"], pw], axis=0)   # (4, C_OUT)
    return {"w_full": w_full, "pvec": pvec}


@jax.jit
def encoder_block(x, edge_index, packed):
    e_cnt = edge_index.shape[1]
    vmem = pl.BlockSpec(memory_space=pltpu.MemorySpace.VMEM)

    # Single-graph call: whole working set (~10 KB) lives in VMEM, no grid.
    # TODO(synk): for many graphs, add a leading "parallel" grid axis over a
    # graph batch (uses v7x's second TensorCore, amortizes dispatch cost).
    x_out, edge_new, perm_col, score_col = pl.pallas_call(
        encoder_block_kernel,
        out_shape=(jax.ShapeDtypeStruct((K, C_OUT), jnp.float32),
                   jax.ShapeDtypeStruct((2, e_cnt), jnp.int32),
                   jax.ShapeDtypeStruct((K, 1), jnp.int32),
                   jax.ShapeDtypeStruct((K, 1), jnp.float32)),
        in_specs=[vmem] * 4,
        out_specs=(vmem, vmem, vmem, vmem),
    )(x, packed["w_full"], packed["pvec"], edge_index)

    perm = perm_col[:, 0]
    score = score_col[:, 0]
    batch_new = jnp.zeros((K,), jnp.int32)       # single-graph batch
    edge_attr_new = None                          # no edge features supplied
    return x_out, edge_new, edge_attr_new, batch_new, perm, score


if __name__ == "__main__":
    key = jax.random.PRNGKey(0)
    k_x, k_w, k_as, k_ad, k_pw = jax.random.split(key, 5)

    x = jax.random.normal(k_x, (N, C_IN), jnp.float32)

    # bidirectional ring graph: 2*N edges
    idx = jnp.arange(N, dtype=jnp.int32)
    src = jnp.concatenate([idx, (idx + 1) % N])
    dst = jnp.concatenate([(idx + 1) % N, idx])
    edge_index = jnp.stack([src, dst]).astype(jnp.int32)   # (2, 32)

    params = {
        "lin_w": jax.random.normal(k_w, (C_IN, C_OUT), jnp.float32) / jnp.sqrt(C_IN),
        "bias": jnp.zeros((1, C_OUT), jnp.float32),
        "att_src": 0.1 * jax.random.normal(k_as, (1, C_OUT), jnp.float32),
        "att_dst": 0.1 * jax.random.normal(k_ad, (1, C_OUT), jnp.float32),
        "ln_gamma": jnp.ones((1, C_OUT), jnp.float32),
        "ln_beta": jnp.zeros((1, C_OUT), jnp.float32),
        "pool_w": 0.1 * jax.random.normal(k_pw, (1, C_OUT), jnp.float32),
    }

    packed = pack_params(params)                 # init-time packing / folding
    out = encoder_block(x, edge_index, packed)
    jax.block_until_ready(out)
    print("KERNEL_OK")
</pallas_src>

<mosaic_0001>
module attributes {stable_mosaic.version = 11 : i64} {
  func.func @encoder_block_kernel(%arg0: memref<16x16xf32, #tpu.memory_space<vmem>>, %arg1: memref<16x48xf32, #tpu.memory_space<vmem>>, %arg2: memref<4x32xf32, #tpu.memory_space<vmem>>, %arg3: memref<2x32xi32, #tpu.memory_space<vmem>>, %arg4: memref<8x32xf32, #tpu.memory_space<vmem>>, %arg5: memref<2x32xi32, #tpu.memory_space<vmem>>, %arg6: memref<8x1xi32, #tpu.memory_space<vmem>>, %arg7: memref<8x1xf32, #tpu.memory_space<vmem>>) attributes {dimension_semantics = [], scalar_prefetch = 0 : i64, scratch_operands = 0 : i64, tpu.core_type = #tpu.core_type<tc>} {
    %c0 = arith.constant 0 : index
    %c0_0 = arith.constant 0 : index
    %0 = vector.load %arg0[%c0, %c0_0] : memref<16x16xf32, #tpu.memory_space<vmem>>, vector<16x16xf32>
    %c0_1 = arith.constant 0 : index
    %c0_2 = arith.constant 0 : index
    %1 = vector.load %arg1[%c0_1, %c0_2] : memref<16x48xf32, #tpu.memory_space<vmem>>, vector<16x48xf32>
    %c0_3 = arith.constant 0 : index
    %c0_4 = arith.constant 0 : index
    %2 = vector.load %arg2[%c0_3, %c0_4] : memref<4x32xf32, #tpu.memory_space<vmem>>, vector<4x32xf32>
    %c0_5 = arith.constant 0 : index
    %c0_6 = arith.constant 0 : index
    %3 = vector.load %arg3[%c0_5, %c0_6] : memref<2x32xi32, #tpu.memory_space<vmem>>, vector<2x32xi32>
    %4 = tpu.iota {dimensions = array<i32: 0>} : vector<16x32xi32>
    %5 = vector.extract_strided_slice %3 {offsets = [0, 0], sizes = [1, 32], strides = [1, 1]} : vector<2x32xi32> to vector<1x32xi32>
    %6 = vector.broadcast %5 : vector<1x32xi32> to vector<16x32xi32>
    %7 = arith.cmpi eq, %4, %6 : vector<16x32xi32>
    %8 = arith.extui %7 : vector<16x32xi1> to vector<16x32xi32>
    %9 = arith.sitofp %8 : vector<16x32xi32> to vector<16x32xf32>
    %10 = vector.extract_strided_slice %3 {offsets = [1, 0], sizes = [1, 32], strides = [1, 1]} : vector<2x32xi32> to vector<1x32xi32>
    %11 = vector.broadcast %10 : vector<1x32xi32> to vector<16x32xi32>
    %12 = arith.cmpi eq, %4, %11 : vector<16x32xi32>
    %13 = arith.extui %12 : vector<16x32xi1> to vector<16x32xi32>
    %14 = arith.sitofp %13 : vector<16x32xi32> to vector<16x32xf32>
    %cst = arith.constant dense<0.000000e+00> : vector<16x16xf32>
    %15 = tpu.matmul %14, %9, %cst {dimension_numbers = #tpu.dot_dimension_numbers<[1], [1], [0], [0], [0, 0, 1, 0], [], []>} : vector<16x32xf32>, vector<16x32xf32>, vector<16x16xf32> -> vector<16x16xf32>
    %16 = tpu.iota {dimensions = array<i32: 0>} : vector<16x16xi32>
    %17 = tpu.iota {dimensions = array<i32: 1>} : vector<16x16xi32>
    %18 = arith.cmpi eq, %16, %17 : vector<16x16xi32>
    %19 = arith.extui %18 : vector<16x16xi1> to vector<16x16xi32>
    %20 = arith.sitofp %19 : vector<16x16xi32> to vector<16x16xf32>
    %21 = arith.addf %15, %20 : vector<16x16xf32>
    %cst_7 = arith.constant 0.000000e+00 : f32
    %22 = vector.broadcast %cst_7 : f32 to vector<16x16xf32>
    %23 = arith.cmpf ogt, %21, %22 : vector<16x16xf32>
    %cst_8 = arith.constant 0.000000e+00 : f32
    %cst_9 = arith.constant -1.000000e+30 : f32
    %24 = vector.broadcast %cst_8 : f32 to vector<16x16xf32>
    %25 = vector.broadcast %cst_9 : f32 to vector<16x16xf32>
    %26 = arith.select %23, %24, %25 : vector<16x16xi1>, vector<16x16xf32>
    %cst_10 = arith.constant dense<0.000000e+00> : vector<16x48xf32>
    %27 = tpu.matmul %0, %1, %cst_10 {dimension_numbers = #tpu.dot_dimension_numbers<[1], [0], [0], [1], [0, 0, 1, 1], [], []>} : vector<16x16xf32>, vector<16x48xf32>, vector<16x48xf32> -> vector<16x48xf32>
    %28 = vector.extract_strided_slice %27 {offsets = [0, 0], sizes = [16, 32], strides = [1, 1]} : vector<16x48xf32> to vector<16x32xf32>
    %29 = vector.extract_strided_slice %27 {offsets = [0, 32], sizes = [16, 8], strides = [1, 1]} : vector<16x48xf32> to vector<16x8xf32>
    %30 = vector.extract_strided_slice %27 {offsets = [0, 40], sizes = [16, 8], strides = [1, 1]} : vector<16x48xf32> to vector<16x8xf32>
    %31 = tpu.transpose %30, [1, 0] : vector<16x8xf32> -> vector<8x16xf32>
    %32 = vector.extract_strided_slice %29 {offsets = [0, 0], sizes = [16, 1], strides = [1, 1]} : vector<16x8xf32> to vector<16x1xf32>
    %33 = vector.extract_strided_slice %31 {offsets = [0, 0], sizes = [1, 16], strides = [1, 1]} : vector<8x16xf32> to vector<1x16xf32>
    %34 = vector.broadcast %32 : vector<16x1xf32> to vector<16x16xf32>
    %35 = vector.broadcast %33 : vector<1x16xf32> to vector<16x16xf32>
    %36 = arith.addf %34, %35 : vector<16x16xf32>
    %37 = vector.extract_strided_slice %29 {offsets = [0, 1], sizes = [16, 1], strides = [1, 1]} : vector<16x8xf32> to vector<16x1xf32>
    %38 = vector.extract_strided_slice %31 {offsets = [1, 0], sizes = [1, 16], strides = [1, 1]} : vector<8x16xf32> to vector<1x16xf32>
    %39 = vector.broadcast %37 : vector<16x1xf32> to vector<16x16xf32>
    %40 = vector.broadcast %38 : vector<1x16xf32> to vector<16x16xf32>
    %41 = arith.addf %39, %40 : vector<16x16xf32>
    %42 = vector.extract_strided_slice %29 {offsets = [0, 2], sizes = [16, 1], strides = [1, 1]} : vector<16x8xf32> to vector<16x1xf32>
    %43 = vector.extract_strided_slice %31 {offsets = [2, 0], sizes = [1, 16], strides = [1, 1]} : vector<8x16xf32> to vector<1x16xf32>
    %44 = vector.broadcast %42 : vector<16x1xf32> to vector<16x16xf32>
    %45 = vector.broadcast %43 : vector<1x16xf32> to vector<16x16xf32>
    %46 = arith.addf %44, %45 : vector<16x16xf32>
    %47 = vector.extract_strided_slice %29 {offsets = [0, 3], sizes = [16, 1], strides = [1, 1]} : vector<16x8xf32> to vector<16x1xf32>
    %48 = vector.extract_strided_slice %31 {offsets = [3, 0], sizes = [1, 16], strides = [1, 1]} : vector<8x16xf32> to vector<1x16xf32>
    %49 = vector.broadcast %47 : vector<16x1xf32> to vector<16x16xf32>
    %50 = vector.broadcast %48 : vector<1x16xf32> to vector<16x16xf32>
    %51 = arith.addf %49, %50 : vector<16x16xf32>
    %52 = tpu.concatenate %36, %41, %46, %51 in 0 : vector<16x16xf32>, vector<16x16xf32>, vector<16x16xf32>, vector<16x16xf32> -> vector<64x16xf32>
    %53 = tpu.concatenate %26, %26, %26, %26 in 0 : vector<16x16xf32>, vector<16x16xf32>, vector<16x16xf32>, vector<16x16xf32> -> vector<64x16xf32>
    %cst_11 = arith.constant 0.000000e+00 : f32
    %54 = vector.broadcast %cst_11 : f32 to vector<64x16xf32>
    %55 = arith.cmpf ogt, %52, %54 : vector<64x16xf32>
    %cst_12 = arith.constant 2.000000e-01 : f32
    %56 = vector.broadcast %cst_12 : f32 to vector<64x16xf32>
    %57 = arith.mulf %56, %52 : vector<64x16xf32>
    %58 = arith.select %55, %52, %57 : vector<64x16xi1>, vector<64x16xf32>
    %59 = arith.addf %58, %53 : vector<64x16xf32>
    %cst_13 = arith.constant dense<0xFF800000> : vector<64xf32>
    %60 = vector.multi_reduction <maximumf>, %59, %cst_13 [1] : vector<64x16xf32> to vector<64xf32>
    %61 = vector.shape_cast %60 : vector<64xf32> to vector<64x1xf32>
    %62 = vector.broadcast %61 : vector<64x1xf32> to vector<64x16xf32>
    %63 = arith.subf %59, %62 : vector<64x16xf32>
    %64 = math.exp %63 : vector<64x16xf32>
    %cst_14 = arith.constant dense<0.000000e+00> : vector<64xf32>
    %65 = vector.multi_reduction <add>, %64, %cst_14 [1] : vector<64x16xf32> to vector<64xf32>
    %66 = vector.shape_cast %65 : vector<64xf32> to vector<64x1xf32>
    %67 = vector.broadcast %66 : vector<64x1xf32> to vector<64x16xf32>
    %68 = arith.divf %64, %67 : vector<64x16xf32>
    %cst_15 = arith.constant dense<0.000000e+00> : vector<64x32xf32>
    %69 = tpu.matmul %68, %28, %cst_15 {dimension_numbers = #tpu.dot_dimension_numbers<[1], [0], [0], [1], [0, 0, 1, 1], [], []>} : vector<64x16xf32>, vector<16x32xf32>, vector<64x32xf32> -> vector<64x32xf32>
    %70 = vector.extract_strided_slice %69 {offsets = [0, 0], sizes = [16, 8], strides = [1, 1]} : vector<64x32xf32> to vector<16x8xf32>
    %71 = vector.extract_strided_slice %69 {offsets = [16, 8], sizes = [16, 8], strides = [1, 1]} : vector<64x32xf32> to vector<16x8xf32>
    %72 = vector.extract_strided_slice %69 {offsets = [32, 16], sizes = [16, 8], strides = [1, 1]} : vector<64x32xf32> to vector<16x8xf32>
    %73 = vector.extract_strided_slice %69 {offsets = [48, 24], sizes = [16, 8], strides = [1, 1]} : vector<64x32xf32> to vector<16x8xf32>
    %74 = tpu.concatenate %70, %71, %72, %73 in 1 : vector<16x8xf32>, vector<16x8xf32>, vector<16x8xf32>, vector<16x8xf32> -> vector<16x32xf32>
    %75 = vector.extract_strided_slice %2 {offsets = [0, 0], sizes = [1, 32], strides = [1, 1]} : vector<4x32xf32> to vector<1x32xf32>
    %76 = vector.broadcast %75 : vector<1x32xf32> to vector<16x32xf32>
    %77 = arith.addf %74, %76 : vector<16x32xf32>
    %cst_16 = arith.constant dense<0.000000e+00> : vector<16xf32>
    %78 = vector.multi_reduction <add>, %77, %cst_16 [1] : vector<16x32xf32> to vector<16xf32>
    %79 = vector.shape_cast %78 : vector<16xf32> to vector<16x1xf32>
    %cst_17 = arith.constant 3.200000e+01 : f32
    %80 = vector.broadcast %cst_17 : f32 to vector<16x1xf32>
    %81 = arith.divf %79, %80 : vector<16x1xf32>
    %82 = vector.broadcast %81 : vector<16x1xf32> to vector<16x32xf32>
    %83 = arith.subf %77, %82 : vector<16x32xf32>
    %84 = arith.mulf %83, %83 : vector<16x32xf32>
    %cst_18 = arith.constant dense<0.000000e+00> : vector<16xf32>
    %85 = vector.multi_reduction <add>, %84, %cst_18 [1] : vector<16x32xf32> to vector<16xf32>
    %86 = vector.shape_cast %85 : vector<16xf32> to vector<16x1xf32>
    %cst_19 = arith.constant 3.200000e+01 : f32
    %87 = vector.broadcast %cst_19 : f32 to vector<16x1xf32>
    %88 = arith.divf %86, %87 : vector<16x1xf32>
    %89 = vector.broadcast %81 : vector<16x1xf32> to vector<16x32xf32>
    %90 = arith.subf %77, %89 : vector<16x32xf32>
    %cst_20 = arith.constant 9.99999974E-6 : f32
    %91 = vector.broadcast %cst_20 : f32 to vector<16x1xf32>
    %92 = arith.addf %88, %91 : vector<16x1xf32>
    %93 = math.rsqrt %92 : vector<16x1xf32>
    %94 = vector.broadcast %93 : vector<16x1xf32> to vector<16x32xf32>
    %95 = arith.mulf %90, %94 : vector<16x32xf32>
    %96 = vector.extract_strided_slice %2 {offsets = [1, 0], sizes = [1, 32], strides = [1, 1]} : vector<4x32xf32> to vector<1x32xf32>
    %97 = vector.broadcast %96 : vector<1x32xf32> to vector<16x32xf32>
    %98 = arith.mulf %95, %97 : vector<16x32xf32>
    %99 = vector.extract_strided_slice %2 {offsets = [2, 0], sizes = [1, 32], strides = [1, 1]} : vector<4x32xf32> to vector<1x32xf32>
    %100 = vector.broadcast %99 : vector<1x32xf32> to vector<16x32xf32>
    %101 = arith.addf %98, %100 : vector<16x32xf32>
    %cst_21 = arith.constant 0.000000e+00 : f32
    %102 = vector.broadcast %cst_21 : f32 to vector<16x32xf32>
    %103 = arith.cmpf ogt, %101, %102 : vector<16x32xf32>
    %cst_22 = arith.constant 2.000000e-01 : f32
    %104 = vector.broadcast %cst_22 : f32 to vector<16x32xf32>
    %105 = arith.mulf %104, %101 : vector<16x32xf32>
    %106 = arith.select %103, %101, %105 : vector<16x32xi1>, vector<16x32xf32>
    %107 = vector.extract_strided_slice %2 {offsets = [3, 0], sizes = [1, 32], strides = [1, 1]} : vector<4x32xf32> to vector<1x32xf32>
    %cst_23 = arith.constant dense<0.000000e+00> : vector<1x16xf32>
    %108 = tpu.matmul %107, %106, %cst_23 {dimension_numbers = #tpu.dot_dimension_numbers<[1], [1], [0], [0], [0, 0, 1, 0], [], []>} : vector<1x32xf32>, vector<16x32xf32>, vector<1x16xf32> -> vector<1x16xf32>
    %109 = math.tanh %108 : vector<1x16xf32>
    %110 = vector.shape_cast %109 : vector<1x16xf32> to vector<1x16xf32>
    %111 = vector.broadcast %110 : vector<1x16xf32> to vector<16x16xf32>
    %112 = tpu.transpose %111, [1, 0] : vector<16x16xf32> -> vector<16x16xf32>
    %113 = arith.cmpf ogt, %112, %111 : vector<16x16xf32>
    %114 = arith.cmpf oeq, %112, %111 : vector<16x16xf32>
    %115 = arith.cmpi slt, %16, %17 : vector<16x16xi32>
    %116 = arith.andi %114, %115 : vector<16x16xi1>
    %117 = arith.ori %113, %116 : vector<16x16xi1>
    %118 = arith.extui %117 : vector<16x16xi1> to vector<16x16xi32>
    %119 = arith.sitofp %118 : vector<16x16xi32> to vector<16x16xf32>
    %cst_24 = arith.constant dense<0.000000e+00> : vector<16xf32>
    %120 = vector.multi_reduction <add>, %119, %cst_24 [0] : vector<16x16xf32> to vector<16xf32>
    %121 = vector.shape_cast %120 : vector<16xf32> to vector<1x16xf32>
    %cst_25 = arith.constant 8.000000e+00 : f32
    %122 = vector.broadcast %cst_25 : f32 to vector<1x16xf32>
    %123 = arith.cmpf olt, %121, %122 : vector<1x16xf32>
    %124 = arith.extui %123 : vector<1x16xi1> to vector<1x16xi32>
    %125 = arith.sitofp %124 : vector<1x16xi32> to vector<1x16xf32>
    %126 = tpu.iota {dimensions = array<i32: 0>} : vector<8x16xi32>
    %127 = arith.sitofp %126 : vector<8x16xi32> to vector<8x16xf32>
    %128 = vector.shape_cast %121 : vector<1x16xf32> to vector<1x16xf32>
    %129 = vector.broadcast %128 : vector<1x16xf32> to vector<8x16xf32>
    %130 = arith.cmpf oeq, %129, %127 : vector<8x16xf32>
    %131 = arith.extui %130 : vector<8x16xi1> to vector<8x16xi32>
    %132 = arith.sitofp %131 : vector<8x16xi32> to vector<8x16xf32>
    %133 = vector.extract_strided_slice %112 {offsets = [0, 0], sizes = [16, 1], strides = [1, 1]} : vector<16x16xf32> to vector<16x1xf32>
    %134 = vector.extract_strided_slice %16 {offsets = [0, 0], sizes = [16, 1], strides = [1, 1]} : vector<16x16xi32> to vector<16x1xi32>
    %135 = arith.sitofp %134 : vector<16x1xi32> to vector<16x1xf32>
    %136 = vector.broadcast %133 : vector<16x1xf32> to vector<16x32xf32>
    %137 = arith.mulf %106, %136 : vector<16x32xf32>
    %138 = tpu.concatenate %137, %133, %135 in 1 : vector<16x32xf32>, vector<16x1xf32>, vector<16x1xf32> -> vector<16x34xf32>
    %cst_26 = arith.constant dense<0.000000e+00> : vector<8x34xf32>
    %139 = tpu.matmul %132, %138, %cst_26 {dimension_numbers = #tpu.dot_dimension_numbers<[1], [0], [0], [1], [0, 0, 1, 1], [], []>} : vector<8x16xf32>, vector<16x34xf32>, vector<8x34xf32> -> vector<8x34xf32>
    %140 = vector.extract_strided_slice %139 {offsets = [0, 0], sizes = [8, 32], strides = [1, 1]} : vector<8x34xf32> to vector<8x32xf32>
    %c0_27 = arith.constant 0 : index
    %c0_28 = arith.constant 0 : index
    %141 = vector.load %arg4[%c0_27, %c0_28] : memref<8x32xf32, #tpu.memory_space<vmem>>, vector<8x32xf32>
    tpu.vector_store %arg4[%c0_27, %c0_28], %140 {strides = array<i32>} : memref<8x32xf32, #tpu.memory_space<vmem>>, vector<8x32xf32>,
    %142 = vector.extract_strided_slice %139 {offsets = [0, 32], sizes = [8, 1], strides = [1, 1]} : vector<8x34xf32> to vector<8x1xf32>
    %c0_29 = arith.constant 0 : index
    %c0_30 = arith.constant 0 : index
    %143 = vector.load %arg7[%c0_29, %c0_30] : memref<8x1xf32, #tpu.memory_space<vmem>>, vector<8x1xf32>
    tpu.vector_store %arg7[%c0_29, %c0_30], %142 {strides = array<i32>} : memref<8x1xf32, #tpu.memory_space<vmem>>, vector<8x1xf32>,
    %144 = vector.extract_strided_slice %139 {offsets = [0, 33], sizes = [8, 1], strides = [1, 1]} : vector<8x34xf32> to vector<8x1xf32>
    %145 = arith.fptosi %144 : vector<8x1xf32> to vector<8x1xi32>
    %c0_31 = arith.constant 0 : index
    %c0_32 = arith.constant 0 : index
    %146 = vector.load %arg6[%c0_31, %c0_32] : memref<8x1xi32, #tpu.memory_space<vmem>>, vector<8x1xi32>
    tpu.vector_store %arg6[%c0_31, %c0_32], %145 {strides = array<i32>} : memref<8x1xi32, #tpu.memory_space<vmem>>, vector<8x1xi32>,
    %147 = tpu.concatenate %121, %125 in 0 : vector<1x16xf32>, vector<1x16xf32> -> vector<2x16xf32>
    %148 = tpu.concatenate %9, %14 in 1 : vector<16x32xf32>, vector<16x32xf32> -> vector<16x64xf32>
    %cst_33 = arith.constant dense<0.000000e+00> : vector<2x64xf32>
    %149 = tpu.matmul %147, %148, %cst_33 {dimension_numbers = #tpu.dot_dimension_numbers<[1], [0], [0], [1], [0, 0, 1, 1], [], []>} : vector<2x16xf32>, vector<16x64xf32>, vector<2x64xf32> -> vector<2x64xf32>
    %150 = vector.extract_strided_slice %149 {offsets = [0, 0], sizes = [1, 32], strides = [1, 1]} : vector<2x64xf32> to vector<1x32xf32>
    %151 = vector.extract_strided_slice %149 {offsets = [0, 32], sizes = [1, 32], strides = [1, 1]} : vector<2x64xf32> to vector<1x32xf32>
    %152 = vector.extract_strided_slice %149 {offsets = [1, 0], sizes = [1, 32], strides = [1, 1]} : vector<2x64xf32> to vector<1x32xf32>
    %cst_34 = arith.constant 5.000000e-01 : f32
    %153 = vector.broadcast %cst_34 : f32 to vector<1x32xf32>
    %154 = arith.cmpf ogt, %152, %153 : vector<1x32xf32>
    %155 = vector.extract_strided_slice %149 {offsets = [1, 32], sizes = [1, 32], strides = [1, 1]} : vector<2x64xf32> to vector<1x32xf32>
    %cst_35 = arith.constant 5.000000e-01 : f32
    %156 = vector.broadcast %cst_35 : f32 to vector<1x32xf32>
    %157 = arith.cmpf ogt, %155, %156 : vector<1x32xf32>
    %158 = arith.andi %154, %157 : vector<1x32xi1>
    %cst_36 = arith.constant -1.000000e+00 : f32
    %159 = vector.broadcast %cst_36 : f32 to vector<1x32xf32>
    %160 = arith.select %158, %150, %159 : vector<1x32xi1>, vector<1x32xf32>
    %cst_37 = arith.constant -1.000000e+00 : f32
    %161 = vector.broadcast %cst_37 : f32 to vector<1x32xf32>
    %162 = arith.select %158, %151, %161 : vector<1x32xi1>, vector<1x32xf32>
    %163 = tpu.concatenate %160, %162 in 0 : vector<1x32xf32>, vector<1x32xf32> -> vector<2x32xf32>
    %164 = arith.fptosi %163 : vector<2x32xf32> to vector<2x32xi32>
    %c0_38 = arith.constant 0 : index
    %c0_39 = arith.constant 0 : index
    %165 = vector.load %arg5[%c0_38, %c0_39] : memref<2x32xi32, #tpu.memory_space<vmem>>, vector<2x32xi32>
    tpu.vector_store %arg5[%c0_38, %c0_39], %164 {strides = array<i32>} : memref<2x32xi32, #tpu.memory_space<vmem>>, vector<2x32xi32>,
    return
  }
}

</mosaic_0001>

<llo_original>
// kernel: encoder_block.1
$region0: #{encoder_block.1}
  #allocation0 [shape = 'u32[]', space=smem, size = 0x4, offset = 0x4, fixed_abs, tag = 'smem constant byte address 0x4 - core index']
  #allocation1 [shape = 'u32[144,128]{1,0:T(1,128)}', space=vmem, size = 0x12000, scoped, tag = 'internal scratch']
  %s0 = inlined_call_operand.hbm [shape: f32[16,16], index: 0, kind: input, shape index: {}]
  %s1 = inlined_call_operand.hbm [shape: f32[16,48], index: 1, kind: input, shape index: {}]
  %s2 = inlined_call_operand.vmem [shape: f32[4,32], index: 2, kind: input, shape index: {}]
  %s3 = inlined_call_operand.vmem [shape: s32[2,32], index: 3, kind: input, shape index: {}]
  %s4 = inlined_call_operand.hbm [shape: f32[8,32], index: 4, kind: output, shape index: {0}]
  %s5 = inlined_call_operand.hbm [shape: s32[2,32], index: 5, kind: output, shape index: {1}]
  %s6 = inlined_call_operand.vmem [shape: s32[8,1], index: 6, kind: output, shape index: {2}]
  %s7 = inlined_call_operand.vmem [shape: f32[8,1], index: 7, kind: output, shape index: {3}]
  %8 = xla_tuple %s4, %s5, %s6, %s7
  %s9 = sld [smem:[#allocation0]]
  $region58: #{encoder_block.1} parent=0
    _
  %s11 = ssub.s32 1, %s9
  %s12 = scalar_select 0, %s11, %s9
  $region1: #{encoder_block.1} parent=0
    #allocation2 [shape = 'u8[8192]{0}', space=vmem, size = 0x2000, scoped, tag = 'input window, operand 0, single buffered']
    #allocation3 [shape = 's32[1]{0}', space=sflag, size = 0x4, scoped, tag = 'scoped memory for encoder_block.1']
    #allocation4 [shape = 's32[1]{0}', space=sflag, size = 0x4, scoped, tag = 'scoped memory for encoder_block.1']
    #allocation5 [shape = 'u8[8192]{0}', space=vmem, size = 0x2000, scoped, tag = 'input window, operand 1, single buffered']
    #allocation6 [shape = 's32[1]{0}', space=sflag, size = 0x4, scoped, tag = 'scoped memory for encoder_block.1']
    #allocation7 [shape = 'u8[4096]{0}', space=vmem, size = 0x1000, scoped, tag = 'output window, operand 0, single buffered']
    #allocation8 [shape = 'u8[1024]{0}', space=vmem, size = 0x400, scoped, tag = 'output window, operand 1, single buffered']
    #allocation9 [shape = 's32[1]{0}', space=sflag, size = 0x4, scoped, tag = 'scoped memory for encoder_block.1']
    %13 = vsyncpa [#allocation3], 0
    %14 = vsyncpa [#allocation6], 0
    %15 = vsyncpa [#allocation4], 0
    %16 = vsyncpa [#allocation9], 0
    // Predicated region
    $region2: #{encoder_block.1} parent=1 // pred_check
      _
    $region3: #{encoder_block.1} parent=1 // pred_check_branch
      %18 = sbr.rel (0) target = $region5
    $region4: #{encoder_block.1} parent=1 // pred_region
      %s20 = ssub.s32 256, 256
      %21 = vsyncadd [#allocation3], %s20
      %s22 = sshll.u32 [#allocation2], 4
      %s23 = int_to_ptr.vmem [resolvable:$true] %s22
      %28 = dma.hbm_to_vmem [thread:$0]  %s0, 256, %s23, [#allocation3], 128, 128, 8
    $region5: #{encoder_block.1} parent=1 // pred_fallthru
      _
    // Predicated region
    $region6: #{encoder_block.1} parent=1 // pred_check
      _
    $region7: #{encoder_block.1} parent=1 // pred_check_branch
      %30 = sbr.rel (0) target = $region9
    $region8: #{encoder_block.1} parent=1 // pred_region
      %s32 = ssub.s32 256, 256
      %33 = vsyncadd [#allocation6], %s32
      %s34 = sshll.u32 [#allocation5], 4
      %s35 = int_to_ptr.vmem [resolvable:$true] %s34
      %40 = dma.hbm_to_vmem [thread:$0]  %s1, 256, %s35, [#allocation6], 128, 128, 8
    $region9: #{encoder_block.1} parent=1 // pred_fallthru
      _
    // Predicated region
    $region10: #{encoder_block.1} parent=1 // pred_check
      _
    $region11: #{encoder_block.1} parent=1 // pred_check_branch
      %42 = sbr.rel (0) target = $region13
    $region12: #{encoder_block.1} parent=1 // pred_region
      _
    $region13: #{encoder_block.1} parent=1 // pred_fallthru
      _
    // Predicated region
    $region14: #{encoder_block.1} parent=1 // pred_check
      _
    $region15: #{encoder_block.1} parent=1 // pred_check_branch
      %44 = sbr.rel (0) target = $region17
    $region16: #{encoder_block.1} parent=1 // pred_region
      _
    $region17: #{encoder_block.1} parent=1 // pred_fallthru
      _
    // Predicated region
    $region18: #{encoder_block.1} parent=1 // pred_check
      _
    $region19: #{encoder_block.1} parent=1 // pred_check_branch
      %46 = sbr.rel (0) target = $region21
    $region20: #{encoder_block.1} parent=1 // pred_region
      %47 = dma.done [#allocation3], 256
    $region21: #{encoder_block.1} parent=1 // pred_fallthru
      _
    // Predicated region
    $region22: #{encoder_block.1} parent=1 // pred_check
      _
    $region23: #{encoder_block.1} parent=1 // pred_check_branch
      %49 = sbr.rel (0) target = $region25
    $region24: #{encoder_block.1} parent=1 // pred_region
      %50 = dma.done [#allocation6], 256
    $region25: #{encoder_block.1} parent=1 // pred_fallthru
      _
    %v51 = vld [vmem:[#allocation2] sm:$0xff]
    %v52 = vld [vmem:[#allocation2 + $0x8] sm:$0xff]
    %v53 = vld [vmem:[#allocation5] sm:$0xff]
    %v54 = vld [vmem:[#allocation5 + $0x8] sm:$0xff]
    %v55 = vld [vmem:[%s2] sm:$0xf]
    %v56 = vld [vmem:[%s3] sm:$0x3]
    %v57 = vlaneseq
    %v58 = vshrl.u32 %v57, 7
    %v59 = vadd.s32 %v58, 8
    %v60 = vlaneseq
    %v61 = vshrl.u32 %v60, 7
    %v62 = vsub.s32 0, %v61
    %v63 = vrot.slane %v56, %v62
    %vm64 = vcmp.eq.s32.totalorder %v58, %v63
    %vm65 = vcmp.eq.s32.totalorder %v59, %v63
    %v66 = vsel %vm64, 1, 0
    %v67 = vsel %vm65, 1, 0
    %v68 = vcvt.s32.f32 %v66
    %v69 = vcvt.s32.f32 %v67
    %v70 = vlaneseq
    %v71 = vshrl.u32 %v70, 7
    %v72 = vsub.s32 1, %v71
    %v73 = vrot.slane %v56, %v72
    %vm74 = vcmp.eq.s32.totalorder %v58, %v73
    %vm75 = vcmp.eq.s32.totalorder %v59, %v73
    %v76 = vsel %vm74, 1, 0
    %v77 = vsel %vm75, 1, 0
    %v78 = vcvt.s32.f32 %v76
    %v79 = vcvt.s32.f32 %v77
    %v80 = vlaneseq
    %v81 = vand.u32 %v80, 127
    %vm82 = vcmp.eq.s32.totalorder %v58, %v81
    %vm83 = vcmp.eq.s32.totalorder %v59, %v81
    %v84 = vsel %vm82, 1, 0
    %v85 = vsel %vm83, 1, 0
    %v86 = vcvt.s32.f32 %v84
    %v87 = vcvt.s32.f32 %v85
    %vm88 = vcmask 261120
    %v90 = vsel %vm88, %v78, 0
    %v93 = vsel %vm88, %v79, 0
    %v96 = vsel %vm88, %v68, 0
    %v99 = vsel %vm88, %v69, 0
    %101 = vmatprep.subr.mxu0 0.0
    %102 = vmatpush1.xpose.msra.mxu0 %v96
    %103 = vmatprep.subr.mxu0 0.0
    %104 = vmatpush1.xpose.msra.mxu0 %v99
    %105 = vmatprep.subr.mxu0 0.0
    %106 = vmatpush1.xpose.msra.mxu0 0.0
    %107 = vmatprep.subr.mxu0 0.0
    %108 = vmatpush1.xpose.msra.mxu0 0.0
    %109 = vmatprep.subr.mxu0 0.0
    %110 = vmatpush1.xpose.msra.mxu0 0.0
    %111 = vmatprep.subr.mxu0 0.0
    %112 = vmatpush1.xpose.msra.mxu0 0.0
    %113 = vmatprep.subr.mxu0 0.0
    %114 = vmatpush1.xpose.msra.mxu0 0.0
    %115 = vmatprep.subr.mxu0 0.0
    %116 = vmatpush1.xpose.msra.mxu0 0.0
    %117 = vmatprep.subr.mxu0 0.0
    %118 = vmatpush1.xpose.msra.mxu0 0.0
    %119 = vmatprep.subr.mxu0 0.0
    %120 = vmatpush1.xpose.msra.mxu0 0.0
    %121 = vmatprep.subr.mxu0 0.0
    %122 = vmatpush1.xpose.msra.mxu0 0.0
    %123 = vmatprep.subr.mxu0 0.0
    %124 = vmatpush1.xpose.msra.mxu0 0.0
    %125 = vmatprep.subr.mxu0 0.0
    %126 = vmatpush1.xpose.msra.mxu0 0.0
    %127 = vmatprep.subr.mxu0 0.0
    %128 = vmatpush1.xpose.msra.mxu0 0.0
    %129 = vmatprep.subr.mxu0 0.0
    %130 = vmatpush1.xpose.msra.mxu0 0.0
    %131 = vmatprep.subr.mxu0 0.0
    %132 = vmatpush1.xpose.msra.mxu0 0.0
    %133 = vmatprep.subr.mxu0 0.0
    %134 = vmatpush1.xpose.msra.mxu0 0.0
    %135 = vmatprep.subr.mxu0 0.0
    %136 = vmatpush1.xpose.msra.mxu0 0.0
    %137 = vmatprep.subr.mxu0 0.0
    %138 = vmatpush1.xpose.msra.mxu0 0.0
    %139 = vmatprep.subr.mxu0 0.0
    %140 = vmatpush1.xpose.msra.mxu0 0.0
    %141 = vmatprep.subr.mxu0 0.0
    %142 = vmatpush1.xpose.msra.mxu0 0.0
    %143 = vmatprep.subr.mxu0 0.0
    %144 = vmatpush1.xpose.msra.mxu0 0.0
    %145 = vmatprep.subr.mxu0 0.0
    %146 = vmatpush1.xpose.msra.mxu0 0.0
    %147 = vmatprep.subr.mxu0 0.0
    %148 = vmatpush1.xpose.msra.mxu0 0.0
    %149 = vmatprep.subr.mxu0 0.0
    %150 = vmatpush1.xpose.msra.mxu0 0.0
    %151 = vmatprep.subr.mxu0 0.0
    %152 = vmatpush1.xpose.msra.mxu0 0.0
    %153 = vmatprep.subr.mxu0 0.0
    %154 = vmatpush1.xpose.msra.mxu0 0.0
    %155 = vmatprep.subr.mxu0 0.0
    %156 = vmatpush1.xpose.msra.mxu0 0.0
    %157 = vmatprep.subr.mxu0 0.0
    %158 = vmatpush1.xpose.msra.mxu0 0.0
    %159 = vmatprep.subr.mxu0 0.0
    %160 = vmatpush1.xpose.msra.mxu0 0.0
    %161 = vmatprep.subr.mxu0 0.0
    %162 = vmatpush1.xpose.msra.mxu0 0.0
    %163 = vmatprep.subr.mxu0 0.0
    %164 = vmatpush1.xpose.msra.mxu0 0.0
    %165 = vmatprep.mubr.f32.mxu0 0.0
    %166 = vmatmul.mubr.f32.gmra.mrb[0].mxu0 %v90
    %v167 = vpop.f32.mrb[0].mxu0
    %v168 = vadd.f32 %v86, %v167
    %v169 = vpop.f32.mrb[0].mxu0
    %170 = vmatprep.mubr.f32.mxu0 0.0
    %171 = vmatmul.mubr.f32.gmra.mrb[0].mxu0 %v93
    %v172 = vpop.f32.mrb[0].mxu0
    %v173 = vadd.f32 %v87, %v172
    %v174 = vpop.f32.mrb[0].mxu0
    %175 = vdwg.mxu0
    %vm176 = vcmp.gt.f32.partialorder %v168, 0.0
    %vm177 = vcmp.gt.f32.partialorder %v173, 0.0
    %v178 = vsel %vm176, 0.0, -1e+30
    %v179 = vsel %vm177, 0.0, -1e+30
    %vm180 = vcmask 130048
    %v182 = vsel %vm180, %v51, 0
    %v185 = vsel %vm180, %v52, 0
    %187 = vmatprep.subr.mxu0 0.0
    %188 = vmatpush1.msra.mxu0 %v53
    %189 = vmatprep.subr.mxu0 0.0
    %190 = vmatpush1.msra.mxu0 %v54
    %191 = vmatprep.subr.mxu0 0.0
    %192 = vmatpush1.msra.mxu0 0.0
    %193 = vmatprep.subr.mxu0 0.0
    %194 = vmatpush1.msra.mxu0 0.0
    %195 = vmatprep.subr.mxu0 0.0
    %196 = vmatpush1.msra.mxu0 0.0
    %197 = vmatprep.subr.mxu0 0.0
    %198 = vmatpush1.msra.mxu0 0.0
    %199 = vmatprep.subr.mxu0 0.0
    %200 = vmatpush1.msra.mxu0 0.0
    %201 = vmatprep.subr.mxu0 0.0
    %202 = vmatpush1.msra.mxu0 0.0
    %203 = vmatprep.subr.mxu0 0.0
    %204 = vmatpush1.msra.mxu0 0.0
    %205 = vmatprep.subr.mxu0 0.0
    %206 = vmatpush1.msra.mxu0 0.0
    %207 = vmatprep.subr.mxu0 0.0
    %208 = vmatpush1.msra.mxu0 0.0
    %209 = vmatprep.subr.mxu0 0.0
    %210 = vmatpush1.msra.mxu0 0.0
    %211 = vmatprep.subr.mxu0 0.0
    %212 = vmatpush1.msra.mxu0 0.0
    %213 = vmatprep.subr.mxu0 0.0
    %214 = vmatpush1.msra.mxu0 0.0
    %215 = vmatprep.subr.mxu0 0.0
    %216 = vmatpush1.msra.mxu0 0.0
    %217 = vmatprep.subr.mxu0 0.0
    %218 = vmatpush1.msra.mxu0 0.0
    %219 = vmatprep.subr.mxu0 0.0
    %220 = vmatpush1.msra.mxu0 0.0
    %221 = vmatprep.subr.mxu0 0.0
    %222 = vmatpush1.msra.mxu0 0.0
    %223 = vmatprep.subr.mxu0 0.0
    %224 = vmatpush1.msra.mxu0 0.0
    %225 = vmatprep.subr.mxu0 0.0
    %226 = vmatpush1.msra.mxu0 0.0
    %227 = vmatprep.subr.mxu0 0.0
    %228 = vmatpush1.msra.mxu0 0.0
    %229 = vmatprep.subr.mxu0 0.0
    %230 = vmatpush1.msra.mxu0 0.0
    %231 = vmatprep.subr.mxu0 0.0
    %232 = vmatpush1.msra.mxu0 0.0
    %233 = vmatprep.subr.mxu0 0.0
    %234 = vmatpush1.msra.mxu0 0.0
    %235 = vmatprep.subr.mxu0 0.0
    %236 = vmatpush1.msra.mxu0 0.0
    %237 = vmatprep.subr.mxu0 0.0
    %238 = vmatpush1.msra.mxu0 0.0
    %239 = vmatprep.subr.mxu0 0.0
    %240 = vmatpush1.msra.mxu0 0.0
    %241 = vmatprep.subr.mxu0 0.0
    %242 = vmatpush1.msra.mxu0 0.0
    %243 = vmatprep.subr.mxu0 0.0
    %244 = vmatpush1.msra.mxu0 0.0
    %245 = vmatprep.subr.mxu0 0.0
    %246 = vmatpush1.msra.mxu0 0.0
    %247 = vmatprep.subr.mxu0 0.0
    %248 = vmatpush1.msra.mxu0 0.0
    %249 = vmatprep.subr.mxu0 0.0
    %250 = vmatpush1.msra.mxu0 0.0
    %251 = vmatprep.mubr.f32.mxu0 0.0
    %252 = vmatmul.mubr.f32.gmra.mrb[0].mxu0 %v182
    %v253 = vpop.f32.mrb[0].mxu0
    %v254 = vadd.f32 0.0, %v253
    %v255 = vpop.f32.mrb[0].mxu0
    %256 = vmatprep.mubr.f32.mxu0 0.0
    %257 = vmatmul.mubr.f32.gmra.mrb[0].mxu0 %v185
    %v258 = vpop.f32.mrb[0].mxu0
    %v259 = vadd.f32 0.0, %v258
    %v260 = vpop.f32.mrb[0].mxu0
    %261 = vdwg.mxu0
    %264 = vrot.lane.b32.xlu0 %v254, 88
    %v265 = vpop.permute.xlu0 %264
    %266 = vrot.lane.b32.xlu0 %v259, 88
    %v267 = vpop.permute.xlu0 %266
    %270 = vxpose.xlu0.b32.start [1/16] %v265, 128
    %271 = vxpose.xlu0.b32.cont [2/16] %v267, 128
    %272 = vxpose.xlu0.b32.cont [3/16] 0.0, 128
    %273 = vxpose.xlu0.b32.cont [4/16] 0.0, 128
    %274 = vxpose.xlu0.b32.cont [5/16] 0.0, 128
    %275 = vxpose.xlu0.b32.cont [6/16] 0.0, 128
    %276 = vxpose.xlu0.b32.cont [7/16] 0.0, 128
    %277 = vxpose.xlu0.b32.cont [8/16] 0.0, 128
    %278 = vxpose.xlu0.b32.cont [9/16] 0.0, 128
    %279 = vxpose.xlu0.b32.cont [10/16] 0.0, 128
    %280 = vxpose.xlu0.b32.cont [11/16] 0.0, 128
    %281 = vxpose.xlu0.b32.cont [12/16] 0.0, 128
    %282 = vxpose.xlu0.b32.cont [13/16] 0.0, 128
    %283 = vxpose.xlu0.b32.cont [14/16] 0.0, 128
    %284 = vxpose.xlu0.b32.cont [15/16] 0.0, 128
    %285 = vxpose.xlu0.b32.end [16/16] 0.0, 128
    %v286 = vpop.trf.xlu0
    %v287 = vpop.trf.xlu0
    %v288 = vpop.trf.xlu0
    %v289 = vpop.trf.xlu0
    %v290 = vpop.trf.xlu0
    %v291 = vpop.trf.xlu0
    %v292 = vpop.trf.xlu0
    %v293 = vpop.trf.xlu0
    %v294 = vpop.trf.xlu0
    %v295 = vpop.trf.xlu0
    %v296 = vpop.trf.xlu0
    %v297 = vpop.trf.xlu0
    %v298 = vpop.trf.xlu0
    %v299 = vpop.trf.xlu0
    %v300 = vpop.trf.xlu0
    %v301 = vpop.trf.xlu0
    %302 = vset.pattern.permute.xlu0 32
    %303 = vperm.xlu0 %302, %v254
    %v304 = vpop.permute.xlu0 %303
    %306 = vset.pattern.permute.xlu0 32
    %307 = vperm.xlu0 %306, %v259
    %v308 = vpop.permute.xlu0 %307
    %v310 = vlaneseq
    %v311 = vshrl.u32 %v310, 7
    %v312 = vsub.s32 0, %v311
    %v313 = vrot.slane %v286, %v312
    %v314 = vadd.f32 %v304, %v313
    %v315 = vadd.f32 %v308, %v313
    %316 = vset.pattern.permute.xlu0 33
    %317 = vperm.xlu0 %316, %v254
    %v318 = vpop.permute.xlu0 %317
    %320 = vset.pattern.permute.xlu0 33
    %321 = vperm.xlu0 %320, %v259
    %v322 = vpop.permute.xlu0 %321
    %v324 = vlaneseq
    %v325 = vshrl.u32 %v324, 7
    %v326 = vsub.s32 1, %v325
    %v327 = vrot.slane %v286, %v326
    %v328 = vadd.f32 %v318, %v327
    %v329 = vadd.f32 %v322, %v327
    %330 = vset.pattern.permute.xlu0 34
    %331 = vperm.xlu0 %330, %v254
    %v332 = vpop.permute.xlu0 %331
    %334 = vset.pattern.permute.xlu0 34
    %335 = vperm.xlu0 %334, %v259
    %v336 = vpop.permute.xlu0 %335
    %v338 = vlaneseq
    %v339 = vshrl.u32 %v338, 7
    %v340 = vsub.s32 2, %v339
    %v341 = vrot.slane %v286, %v340
    %v342 = vadd.f32 %v332, %v341
    %v343 = vadd.f32 %v336, %v341
    %344 = vset.pattern.permute.xlu0 35
    %345 = vperm.xlu0 %344, %v254
    %v346 = vpop.permute.xlu0 %345
    %348 = vset.pattern.permute.xlu0 35
    %349 = vperm.xlu0 %348, %v259
    %v350 = vpop.permute.xlu0 %349
    %v352 = vlaneseq
    %v353 = vshrl.u32 %v352, 7
    %v354 = vsub.s32 3, %v353
    %v355 = vrot.slane %v286, %v354
    %v356 = vadd.f32 %v346, %v355
    %v357 = vadd.f32 %v350, %v355
    %vm358 = vcmp.gt.f32.partialorder %v314, 0.0
    %vm359 = vcmp.gt.f32.partialorder %v315, 0.0
    %vm360 = vcmp.gt.f32.partialorder %v328, 0.0
    %vm361 = vcmp.gt.f32.partialorder %v329, 0.0
    %vm362 = vcmp.gt.f32.partialorder %v342, 0.0
    %vm363 = vcmp.gt.f32.partialorder %v343, 0.0
    %vm364 = vcmp.gt.f32.partialorder %v356, 0.0
    %vm365 = vcmp.gt.f32.partialorder %v357, 0.0
    %v366 = vmul.f32 %v314, 0.2
    %v367 = vmul.f32 %v315, 0.2
    %v368 = vmul.f32 %v328, 0.2
    %v369 = vmul.f32 %v329, 0.2
    %v370 = vmul.f32 %v342, 0.2
    %v371 = vmul.f32 %v343, 0.2
    %v372 = vmul.f32 %v356, 0.2
    %v373 = vmul.f32 %v357, 0.2
    %v374 = vsel %vm358, %v314, %v366
    %v375 = vsel %vm359, %v315, %v367
    %v376 = vsel %vm360, %v328, %v368
    %v377 = vsel %vm361, %v329, %v369
    %v378 = vsel %vm362, %v342, %v370
    %v379 = vsel %vm363, %v343, %v371
    %v380 = vsel %vm364, %v356, %v372
    %v381 = vsel %vm365, %v357, %v373
    %v382 = vadd.f32 %v374, %v178
    %v383 = vadd.f32 %v375, %v179
    %v384 = vadd.f32 %v376, %v178
    %v385 = vadd.f32 %v377, %v179
    %v386 = vadd.f32 %v378, %v178
    %v387 = vadd.f32 %v379, %v179
    %v388 = vadd.f32 %v380, %v178
    %v389 = vadd.f32 %v381, %v179
    %v390 = vsel %vm180, %v382, -inf
    %391 = vmax.xlane.f32.xlu0 %v390
    %v392 = vpop.xlane.xlu0 %391
    %v393 = vsel %vm180, %v383, -inf
    %394 = vmax.xlane.f32.xlu0 %v393
    %v395 = vpop.xlane.xlu0 %394
    %v396 = vsel %vm180, %v384, -inf
    %397 = vmax.xlane.f32.xlu0 %v396
    %v398 = vpop.xlane.xlu0 %397
    %v399 = vsel %vm180, %v385, -inf
    %400 = vmax.xlane.f32.xlu0 %v399
    %v401 = vpop.xlane.xlu0 %400
    %v402 = vsel %vm180, %v386, -inf
    %403 = vmax.xlane.f32.xlu0 %v402
    %v404 = vpop.xlane.xlu0 %403
    %v405 = vsel %vm180, %v387, -inf
    %406 = vmax.xlane.f32.xlu0 %v405
    %v407 = vpop.xlane.xlu0 %406
    %v408 = vsel %vm180, %v388, -inf
    %409 = vmax.xlane.f32.xlu0 %v408
    %v410 = vpop.xlane.xlu0 %409
    %v411 = vsel %vm180, %v389, -inf
    %412 = vmax.xlane.f32.xlu0 %v411
    %v413 = vpop.xlane.xlu0 %412
    %v414 = vsub.f32 %v382, %v392
    %v415 = vsub.f32 %v383, %v395
    %v416 = vsub.f32 %v384, %v398
    %v417 = vsub.f32 %v385, %v401
    %v418 = vsub.f32 %v386, %v404
    %v419 = vsub.f32 %v387, %v407
    %v420 = vsub.f32 %v388, %v410
    %v421 = vsub.f32 %v389, %v413
    %v422 = vmul.f32 %v414, 1.442695
    %v423 = vpow.pop %v422
    %v424 = vmul.f32 %v415, 1.442695
    %v425 = vpow.pop %v424
    %v426 = vmul.f32 %v416, 1.442695
    %v427 = vpow.pop %v426
    %v428 = vmul.f32 %v417, 1.442695
    %v429 = vpow.pop %v428
    %v430 = vmul.f32 %v418, 1.442695
    %v431 = vpow.pop %v430
    %v432 = vmul.f32 %v419, 1.442695
    %v433 = vpow.pop %v432
    %v434 = vmul.f32 %v420, 1.442695
    %v435 = vpow.pop %v434
    %v436 = vmul.f32 %v421, 1.442695
    %v437 = vpow.pop %v436
    %v438 = vsel %vm180, %v423, 0.0
    %439 = vadd.xlane.f32.xlu0 %v438
    %v440 = vpop.xlane.xlu0 %439
    %v441 = vsel %vm180, %v425, 0.0
    %442 = vadd.xlane.f32.xlu0 %v441
    %v443 = vpop.xlane.xlu0 %442
    %v444 = vsel %vm180, %v427, 0.0
    %445 = vadd.xlane.f32.xlu0 %v444
    %v446 = vpop.xlane.xlu0 %445
    %v447 = vsel %vm180, %v429, 0.0
    %448 = vadd.xlane.f32.xlu0 %v447
    %v449 = vpop.xlane.xlu0 %448
    %v450 = vsel %vm180, %v431, 0.0
    %451 = vadd.xlane.f32.xlu0 %v450
    %v452 = vpop.xlane.xlu0 %451
    %v453 = vsel %vm180, %v433, 0.0
    %454 = vadd.xlane.f32.xlu0 %v453
    %v455 = vpop.xlane.xlu0 %454
    %v456 = vsel %vm180, %v435, 0.0
    %457 = vadd.xlane.f32.xlu0 %v456
    %v458 = vpop.xlane.xlu0 %457
    %v459 = vsel %vm180, %v437, 0.0
    %460 = vadd.xlane.f32.xlu0 %v459
    %v461 = vpop.xlane.xlu0 %460
    %v462 = vrcp.pop %v440
    %v463 = vmul.f32 %v423, %v462
    %v464 = vrcp.pop %v443
    %v465 = vmul.f32 %v425, %v464
    %v466 = vrcp.pop %v446
    %v467 = vmul.f32 %v427, %v466
    %v468 = vrcp.pop %v449
    %v469 = vmul.f32 %v429, %v468
    %v470 = vrcp.pop %v452
    %v471 = vmul.f32 %v431, %v470
    %v472 = vrcp.pop %v455
    %v473 = vmul.f32 %v433, %v472
    %v474 = vrcp.pop %v458
    %v475 = vmul.f32 %v435, %v474
    %v476 = vrcp.pop %v461
    %v477 = vmul.f32 %v437, %v476
    %v479 = vsel %vm180, %v463, 0
    %v482 = vsel %vm180, %v465, 0
    %v485 = vsel %vm180, %v467, 0
    %v488 = vsel %vm180, %v469, 0
    %v491 = vsel %vm180, %v471, 0
    %v494 = vsel %vm180, %v473, 0
    %v497 = vsel %vm180, %v475, 0
    %v500 = vsel %vm180, %v477, 0
    %502 = vmatprep.subr.mxu0 0.0
    %503 = vmatpush1.msra.mxu0 %v254
    %504 = vmatprep.subr.mxu0 0.0
    %505 = vmatpush1.msra.mxu0 %v259
    %506 = vmatprep.subr.mxu0 0.0
    %507 = vmatpush1.msra.mxu0 0.0
    %508 = vmatprep.subr.mxu0 0.0
    %509 = vmatpush1.msra.mxu0 0.0
    %510 = vmatprep.subr.mxu0 0.0
    %511 = vmatpush1.msra.mxu0 0.0
    %512 = vmatprep.subr.mxu0 0.0
    %513 = vmatpush1.msra.mxu0 0.0
    %514 = vmatprep.subr.mxu0 0.0
    %515 = vmatpush1.msra.mxu0 0.0
    %516 = vmatprep.subr.mxu0 0.0
    %517 = vmatpush1.msra.mxu0 0.0
    %518 = vmatprep.subr.mxu0 0.0
    %519 = vmatpush1.msra.mxu0 0.0
    %520 = vmatprep.subr.mxu0 0.0
    %521 = vmatpush1.msra.mxu0 0.0
    %522 = vmatprep.subr.mxu0 0.0
    %523 = vmatpush1.msra.mxu0 0.0
    %524 = vmatprep.subr.mxu0 0.0
    %525 = vmatpush1.msra.mxu0 0.0
    %526 = vmatprep.subr.mxu0 0.0
    %527 = vmatpush1.msra.mxu0 0.0
    %528 = vmatprep.subr.mxu0 0.0
    %529 = vmatpush1.msra.mxu0 0.0
    %530 = vmatprep.subr.mxu0 0.0
    %531 = vmatpush1.msra.mxu0 0.0
    %532 = vmatprep.subr.mxu0 0.0
    %533 = vmatpush1.msra.mxu0 0.0
    %534 = vmatprep.subr.mxu0 0.0
    %535 = vmatpush1.msra.mxu0 0.0
    %536 = vmatprep.subr.mxu0 0.0
    %537 = vmatpush1.msra.mxu0 0.0
    %538 = vmatprep.subr.mxu0 0.0
    %539 = vmatpush1.msra.mxu0 0.0
    %540 = vmatprep.subr.mxu0 0.0
    %541 = vmatpush1.msra.mxu0 0.0
    %542 = vmatprep.subr.mxu0 0.0
    %543 = vmatpush1.msra.mxu0 0.0
    %544 = vmatprep.subr.mxu0 0.0
    %545 = vmatpush1.msra.mxu0 0.0
    %546 = vmatprep.subr.mxu0 0.0
    %547 = vmatpush1.msra.mxu0 0.0
    %548 = vmatprep.subr.mxu0 0.0
    %549 = vmatpush1.msra.mxu0 0.0
    %550 = vmatprep.subr.mxu0 0.0
    %551 = vmatpush1.msra.mxu0 0.0
    %552 = vmatprep.subr.mxu0 0.0
    %553 = vmatpush1.msra.mxu0 0.0
    %554 = vmatprep.subr.mxu0 0.0
    %555 = vmatpush1.msra.mxu0 0.0
    %556 = vmatprep.subr.mxu0 0.0
    %557 = vmatpush1.msra.mxu0 0.0
    %558 = vmatprep.subr.mxu0 0.0
    %559 = vmatpush1.msra.mxu0 0.0
    %560 = vmatprep.subr.mxu0 0.0
    %561 = vmatpush1.msra.mxu0 0.0
    %562 = vmatprep.subr.mxu0 0.0
    %563 = vmatpush1.msra.mxu0 0.0
    %564 = vmatprep.subr.mxu0 0.0
    %565 = vmatpush1.msra.mxu0 0.0
    %566 = vmatprep.mubr.f32.mxu0 0.0
    %567 = vmatmul.mubr.f32.gmra.mrb[0].mxu0 %v479
    %v568 = vpop.f32.mrb[0].mxu0
    %v569 = vadd.f32 0.0, %v568
    %v570 = vpop.f32.mrb[0].mxu0
    %571 = vmatprep.mubr.f32.mxu0 0.0
    %572 = vmatmul.mubr.f32.gmra.mrb[0].mxu0 %v482
    %v573 = vpop.f32.mrb[0].mxu0
    %v574 = vadd.f32 0.0, %v573
    %v575 = vpop.f32.mrb[0].mxu0
    %576 = vmatprep.mubr.f32.mxu0 0.0
    %577 = vmatmul.mubr.f32.gmra.mrb[0].mxu0 %v485
    %v578 = vpop.f32.mrb[0].mxu0
    %v579 = vadd.f32 0.0, %v578
    %v580 = vpop.f32.mrb[0].mxu0
    %581 = vmatprep.mubr.f32.mxu0 0.0
    %582 = vmatmul.mubr.f32.gmra.mrb[0].mxu0 %v488
    %v583 = vpop.f32.mrb[0].mxu0
    %v584 = vadd.f32 0.0, %v583
    %v585 = vpop.f32.mrb[0].mxu0
    %586 = vmatprep.mubr.f32.mxu0 0.0
    %587 = vmatmul.mubr.f32.gmra.mrb[0].mxu0 %v491
    %v588 = vpop.f32.mrb[0].mxu0
    %v589 = vadd.f32 0.0, %v588
    %v590 = vpop.f32.mrb[0].mxu0
    %591 = vmatprep.mubr.f32.mxu0 0.0
    %592 = vmatmul.mubr.f32.gmra.mrb[0].mxu0 %v494
    %v593 = vpop.f32.mrb[0].mxu0
    %v594 = vadd.f32 0.0, %v593
    %v595 = vpop.f32.mrb[0].mxu0
    %596 = vmatprep.mubr.f32.mxu0 0.0
    %597 = vmatmul.mubr.f32.gmra.mrb[0].mxu0 %v497
    %v598 = vpop.f32.mrb[0].mxu0
    %v599 = vadd.f32 0.0, %v598
    %v600 = vpop.f32.mrb[0].mxu0
    %601 = vmatprep.mubr.f32.mxu0 0.0
    %602 = vmatmul.mubr.f32.gmra.mrb[0].mxu0 %v500
    %v603 = vpop.f32.mrb[0].mxu0
    %v604 = vadd.f32 0.0, %v603
    %v605 = vpop.f32.mrb[0].mxu0
    %606 = vdwg.mxu0
    %vm607 = vcmask 64512
    %v608 = vsel %vm607, %v569, %v579
    %v609 = vsel %vm607, %v574, %v584
    %v610 = vsel %vm180, %v608, %v589
    %v611 = vsel %vm180, %v609, %v594
    %vm612 = vcmask 195584
    %v613 = vsel %vm612, %v610, %v599
    %v614 = vsel %vm612, %v611, %v604
    %v615 = vlaneseq
    %v616 = vshrl.u32 %v615, 7
    %v617 = vsub.s32 0, %v616
    %v618 = vrot.slane %v55, %v617
    %v619 = vadd.f32 %v613, %v618
    %v620 = vadd.f32 %v614, %v618
    %v621 = vsel %vm88, %v619, 0.0
    %622 = vadd.xlane.f32.xlu0 %v621
    %v623 = vpop.xlane.xlu0 %622
    %v624 = vsel %vm88, %v620, 0.0
    %625 = vadd.xlane.f32.xlu0 %v624
    %v626 = vpop.xlane.xlu0 %625
    %v627 = vrcp.pop 32.0
    %v628 = vmul.f32 %v623, %v627
    %v629 = vmul.f32 %v626, %v627
    %v630 = vsub.f32 %v619, %v628
    %v631 = vsub.f32 %v620, %v629
    %v632 = vmul.f32 %v630, %v630
    %v633 = vmul.f32 %v631, %v631
    %v634 = vsel %vm88, %v632, 0.0
    %635 = vadd.xlane.f32.xlu0 %v634
    %v636 = vpop.xlane.xlu0 %635
    %v637 = vsel %vm88, %v633, 0.0
    %638 = vadd.xlane.f32.xlu0 %v637
    %v639 = vpop.xlane.xlu0 %638
    %v640 = vmul.f32 %v636, %v627
    %v641 = vmul.f32 %v639, %v627
    %v642 = vadd.f32 %v640, 1e-05
    %v643 = vadd.f32 %v641, 1e-05
    %v644 = vrsqrt.pop %v642
    %v645 = vrsqrt.pop %v643
    %v646 = vmul.f32 %v630, %v644
    %v647 = vmul.f32 %v631, %v645
    %v648 = vlaneseq
    %v649 = vshrl.u32 %v648, 7
    %v650 = vsub.s32 1, %v649
    %v651 = vrot.slane %v55, %v650
    %v652 = vmul.f32 %v646, %v651
    %v653 = vmul.f32 %v647, %v651
    %v654 = vlaneseq
    %v655 = vshrl.u32 %v654, 7
    %v656 = vsub.s32 2, %v655
    %v657 = vrot.slane %v55, %v656
    %v658 = vadd.f32 %v652, %v657
    %v659 = vadd.f32 %v653, %v657
    %vm660 = vcmp.gt.f32.partialorder %v658, 0.0
    %vm661 = vcmp.gt.f32.partialorder %v659, 0.0
    %v662 = vmul.f32 %v658, 0.2
    %v663 = vmul.f32 %v659, 0.2
    %v664 = vsel %vm660, %v658, %v662
    %v665 = vsel %vm661, %v659, %v663
    %v667 = vrot.slane %v55, 3
    %v668 = vsel %vm88, %v667, 0
    %v671 = vsel %vm88, %v664, 0
    %v674 = vsel %vm88, %v665, 0
    %676 = vmatprep.subr.mxu0 0.0
    %677 = vmatpush1.xpose.msra.mxu0 %v671
    %678 = vmatprep.subr.mxu0 0.0
    %679 = vmatpush1.xpose.msra.mxu0 %v674
    %680 = vmatprep.subr.mxu0 0.0
    %681 = vmatpush1.xpose.msra.mxu0 0.0
    %682 = vmatprep.subr.mxu0 0.0
    %683 = vmatpush1.xpose.msra.mxu0 0.0
    %684 = vmatprep.subr.mxu0 0.0
    %685 = vmatpush1.xpose.msra.mxu0 0.0
    %686 = vmatprep.subr.mxu0 0.0
    %687 = vmatpush1.xpose.msra.mxu0 0.0
    %688 = vmatprep.subr.mxu0 0.0
    %689 = vmatpush1.xpose.msra.mxu0 0.0
    %690 = vmatprep.subr.mxu0 0.0
    %691 = vmatpush1.xpose.msra.mxu0 0.0
    %692 = vmatprep.subr.mxu0 0.0
    %693 = vmatpush1.xpose.msra.mxu0 0.0
    %694 = vmatprep.subr.mxu0 0.0
    %695 = vmatpush1.xpose.msra.mxu0 0.0
    %696 = vmatprep.subr.mxu0 0.0
    %697 = vmatpush1.xpose.msra.mxu0 0.0
    %698 = vmatprep.subr.mxu0 0.0
    %699 = vmatpush1.xpose.msra.mxu0 0.0
    %700 = vmatprep.subr.mxu0 0.0
    %701 = vmatpush1.xpose.msra.mxu0 0.0
    %702 = vmatprep.subr.mxu0 0.0
    %703 = vmatpush1.xpose.msra.mxu0 0.0
    %704 = vmatprep.subr.mxu0 0.0
    %705 = vmatpush1.xpose.msra.mxu0 0.0
    %706 = vmatprep.subr.mxu0 0.0
    %707 = vmatpush1.xpose.msra.mxu0 0.0
    %708 = vmatprep.subr.mxu0 0.0
    %709 = vmatpush1.xpose.msra.mxu0 0.0
    %710 = vmatprep.subr.mxu0 0.0
    %711 = vmatpush1.xpose.msra.mxu0 0.0
    %712 = vmatprep.subr.mxu0 0.0
    %713 = vmatpush1.xpose.msra.mxu0 0.0
    %714 = vmatprep.subr.mxu0 0.0
    %715 = vmatpush1.xpose.msra.mxu0 0.0
    %716 = vmatprep.subr.mxu0 0.0
    %717 = vmatpush1.xpose.msra.mxu0 0.0
    %718 = vmatprep.subr.mxu0 0.0
    %719 = vmatpush1.xpose.msra.mxu0 0.0
    %720 = vmatprep.subr.mxu0 0.0
    %721 = vmatpush1.xpose.msra.mxu0 0.0
    %722 = vmatprep.subr.mxu0 0.0
    %723 = vmatpush1.xpose.msra.mxu0 0.0
    %724 = vmatprep.subr.mxu0 0.0
    %725 = vmatpush1.xpose.msra.mxu0 0.0
    %726 = vmatprep.subr.mxu0 0.0
    %727 = vmatpush1.xpose.msra.mxu0 0.0
    %728 = vmatprep.subr.mxu0 0.0
    %729 = vmatpush1.xpose.msra.mxu0 0.0
    %730 = vmatprep.subr.mxu0 0.0
    %731 = vmatpush1.xpose.msra.mxu0 0.0
    %732 = vmatprep.subr.mxu0 0.0
    %733 = vmatpush1.xpose.msra.mxu0 0.0
    %734 = vmatprep.subr.mxu0 0.0
    %735 = vmatpush1.xpose.msra.mxu0 0.0
    %736 = vmatprep.subr.mxu0 0.0
    %737 = vmatpush1.xpose.msra.mxu0 0.0
    %738 = vmatprep.subr.mxu0 0.0
    %739 = vmatpush1.xpose.msra.mxu0 0.0
    %740 = vmatprep.mubr.f32.mxu0 0.0
    %741 = vmatmul.mubr.f32.gmra.mrb[0].mxu0 %v668
    %v742 = vpop.f32.mrb[0].mxu0
    %v743 = vadd.f32 0.0, %v742
    %v744 = vpop.f32.mrb[0].mxu0
    %745 = vdwg.mxu0
    %v746 = vtanh.pop %v743
    %v747 = vlaneseq
    %v748 = vshrl.u32 %v747, 7
    %v749 = vsub.s32 0, %v748
    %v750 = vrot.slane %v746, %v749
    %751 = vxpose.xlu0.b32.start [1/16] %v750, 128
    %752 = vxpose.xlu0.b32.cont [2/16] %v750, 128
    %753 = vxpose.xlu0.b32.cont [3/16] 0.0, 128
    %754 = vxpose.xlu0.b32.cont [4/16] 0.0, 128
    %755 = vxpose.xlu0.b32.cont [5/16] 0.0, 128
    %756 = vxpose.xlu0.b32.cont [6/16] 0.0, 128
    %757 = vxpose.xlu0.b32.cont [7/16] 0.0, 128
    %758 = vxpose.xlu0.b32.cont [8/16] 0.0, 128
    %759 = vxpose.xlu0.b32.cont [9/16] 0.0, 128
    %760 = vxpose.xlu0.b32.cont [10/16] 0.0, 128
    %761 = vxpose.xlu0.b32.cont [11/16] 0.0, 128
    %762 = vxpose.xlu0.b32.cont [12/16] 0.0, 128
    %763 = vxpose.xlu0.b32.cont [13/16] 0.0, 128
    %764 = vxpose.xlu0.b32.cont [14/16] 0.0, 128
    %765 = vxpose.xlu0.b32.cont [15/16] 0.0, 128
    %766 = vxpose.xlu0.b32.end [16/16] 0.0, 128
    %v767 = vpop.trf.xlu0
    %v768 = vpop.trf.xlu0
    %v769 = vpop.trf.xlu0
    %v770 = vpop.trf.xlu0
    %v771 = vpop.trf.xlu0
    %v772 = vpop.trf.xlu0
    %v773 = vpop.trf.xlu0
    %v774 = vpop.trf.xlu0
    %v775 = vpop.trf.xlu0
    %v776 = vpop.trf.xlu0
    %v777 = vpop.trf.xlu0
    %v778 = vpop.trf.xlu0
    %v779 = vpop.trf.xlu0
    %v780 = vpop.trf.xlu0
    %v781 = vpop.trf.xlu0
    %v782 = vpop.trf.xlu0
    %vm783 = vcmp.gt.f32.partialorder %v767, %v750
    %vm784 = vcmp.gt.f32.partialorder %v768, %v750
    %vm785 = vcmp.eq.f32.partialorder %v767, %v750
    %vm786 = vcmp.eq.f32.partialorder %v768, %v750
    %vm787 = vcmp.lt.s32.totalorder %v58, %v81
    %vm788 = vcmp.lt.s32.totalorder %v59, %v81
    %vm789 = vmand %vm785, %vm787
    %vm790 = vmand %vm786, %vm788
    %vm791 = vmor %vm783, %vm789
    %vm792 = vmor %vm784, %vm790
    %v793 = vsel %vm791, 1, 0
    %v794 = vsel %vm792, 1, 0
    %v795 = vcvt.s32.f32 %v793
    %v796 = vcvt.s32.f32 %v794
    %v797 = vsel %vm180, %v795, 0.0
    %v798 = vsel %vm180, %v796, 0.0
    %v799 = vadd.f32 %v797, %v798
    %v800 = vrot.slane %v799, 4
    %v801 = vadd.f32 %v799, %v800
    %v802 = vrot.slane %v801, 2
    %v803 = vadd.f32 %v801, %v802
    %v804 = vrot.slane %v803, 1
    %v805 = vadd.f32 %v803, %v804
    %vm806 = vcmp.lt.f32.partialorder %v805, 8.0
    %v807 = vsel %vm806, 1, 0
    %v808 = vcvt.s32.f32 %v807
    %v809 = vcvt.s32.f32 %v58
    %vm810 = vcmp.eq.f32.partialorder %v805, %v809
    %v811 = vsel %vm810, 1, 0
    %v812 = vcvt.s32.f32 %v811
    %v813 = vcvt.s32.f32 %v59
    %815 = vset.pattern.permute.xlu0 0
    %816 = vperm.xlu0 %815, %v767
    %v817 = vpop.permute.xlu0 %816
    %820 = vset.pattern.permute.xlu0 0
    %821 = vperm.xlu0 %820, %v768
    %v822 = vpop.permute.xlu0 %821
    %v824 = vmul.f32 %v664, %v817
    %v825 = vmul.f32 %v665, %v822
    %826 = vrot.lane.b32.xlu0 %v767, 32
    %v827 = vpop.permute.xlu0 %826
    %828 = vrot.lane.b32.xlu0 %v768, 32
    %v829 = vpop.permute.xlu0 %828
    %v832 = vsel %vm88, %v824, %v827
    %v833 = vsel %vm88, %v825, %v829
    %vm834 = vcmask 269312
    %v835 = vsel %vm834, %v832, %v809
    %v836 = vsel %vm834, %v833, %v813
    %v838 = vsel %vm180, %v812, 0
    %840 = vmatprep.subr.mxu0 0.0
    %841 = vmatpush1.msra.mxu0 %v835
    %842 = vmatprep.subr.mxu0 0.0
    %843 = vmatpush1.msra.mxu0 %v836
    %844 = vmatprep.subr.mxu0 0.0
    %845 = vmatpush1.msra.mxu0 0.0
    %846 = vmatprep.subr.mxu0 0.0
    %847 = vmatpush1.msra.mxu0 0.0
    %848 = vmatprep.subr.mxu0 0.0
    %849 = vmatpush1.msra.mxu0 0.0
    %850 = vmatprep.subr.mxu0 0.0
    %851 = vmatpush1.msra.mxu0 0.0
    %852 = vmatprep.subr.mxu0 0.0
    %853 = vmatpush1.msra.mxu0 0.0
    %854 = vmatprep.subr.mxu0 0.0
    %855 = vmatpush1.msra.mxu0 0.0
    %856 = vmatprep.subr.mxu0 0.0
    %857 = vmatpush1.msra.mxu0 0.0
    %858 = vmatprep.subr.mxu0 0.0
    %859 = vmatpush1.msra.mxu0 0.0
    %860 = vmatprep.subr.mxu0 0.0
    %861 = vmatpush1.msra.mxu0 0.0
    %862 = vmatprep.subr.mxu0 0.0
    %863 = vmatpush1.msra.mxu0 0.0
    %864 = vmatprep.subr.mxu0 0.0
    %865 = vmatpush1.msra.mxu0 0.0
    %866 = vmatprep.subr.mxu0 0.0
    %867 = vmatpush1.msra.mxu0 0.0
    %868 = vmatprep.subr.mxu0 0.0
    %869 = vmatpush1.msra.mxu0 0.0
    %870 = vmatprep.subr.mxu0 0.0
    %871 = vmatpush1.msra.mxu0 0.0
    %872 = vmatprep.subr.mxu0 0.0
    %873 = vmatpush1.msra.mxu0 0.0
    %874 = vmatprep.subr.mxu0 0.0
    %875 = vmatpush1.msra.mxu0 0.0
    %876 = vmatprep.subr.mxu0 0.0
    %877 = vmatpush1.msra.mxu0 0.0
    %878 = vmatprep.subr.mxu0 0.0
    %879 = vmatpush1.msra.mxu0 0.0
    %880 = vmatprep.subr.mxu0 0.0
    %881 = vmatpush1.msra.mxu0 0.0
    %882 = vmatprep.subr.mxu0 0.0
    %883 = vmatpush1.msra.mxu0 0.0
    %884 = vmatprep.subr.mxu0 0.0
    %885 = vmatpush1.msra.mxu0 0.0
    %886 = vmatprep.subr.mxu0 0.0
    %887 = vmatpush1.msra.mxu0 0.0
    %888 = vmatprep.subr.mxu0 0.0
    %889 = vmatpush1.msra.mxu0 0.0
    %890 = vmatprep.subr.mxu0 0.0
    %891 = vmatpush1.msra.mxu0 0.0
    %892 = vmatprep.subr.mxu0 0.0
    %893 = vmatpush1.msra.mxu0 0.0
    %894 = vmatprep.subr.mxu0 0.0
    %895 = vmatpush1.msra.mxu0 0.0
    %896 = vmatprep.subr.mxu0 0.0
    %897 = vmatpush1.msra.mxu0 0.0
    %898 = vmatprep.subr.mxu0 0.0
    %899 = vmatpush1.msra.mxu0 0.0
    %900 = vmatprep.subr.mxu0 0.0
    %901 = vmatpush1.msra.mxu0 0.0
    %902 = vmatprep.subr.mxu0 0.0
    %903 = vmatpush1.msra.mxu0 0.0
    %904 = vmatprep.mubr.f32.mxu0 0.0
    %905 = vmatmul.mubr.f32.gmra.mrb[0].mxu0 %v838
    %v906 = vpop.f32.mrb[0].mxu0
    %v907 = vadd.f32 0.0, %v906
    %v908 = vpop.f32.mrb[0].mxu0
    %909 = vdwg.mxu0
    %910 = vst.msk [vmem:[#allocation7] sm:$0xff] %vm88, %v907
    %912 = vrot.lane.b32.xlu0 %v907, 96
    %v913 = vpop.permute.xlu0 %912
    %vm915 = vcmask 7168
    %916 = vst.msk [vmem:[%s7] sm:$0xff] %vm915, %v913
    %v917 = vcvt.f32.s32.to.zero.pseudo %v907
    %918 = vrot.lane.b32.xlu0 %v917, 95
    %v919 = vpop.permute.xlu0 %918
    %920 = vst.msk [vmem:[%s6] sm:$0xff] %vm915, %v919
    %vm921 = vcmask 1040384
    %v922 = vsel %vm921, %v805, %v808
    %923 = vrot.lane.b32.xlu0 %v78, 32
    %v924 = vpop.permute.xlu0 %923
    %925 = vrot.lane.b32.xlu0 %v79, 32
    %v926 = vpop.permute.xlu0 %925
    %v929 = vsel %vm88, %v68, %v924
    %v930 = vsel %vm88, %v69, %v926
    %v932 = vsel %vm180, %v922, 0
    %934 = vmatprep.subr.mxu0 0.0
    %935 = vmatpush1.msra.mxu0 %v929
    %936 = vmatprep.subr.mxu0 0.0
    %937 = vmatpush1.msra.mxu0 %v930
    %938 = vmatprep.subr.mxu0 0.0
    %939 = vmatpush1.msra.mxu0 0.0
    %940 = vmatprep.subr.mxu0 0.0
    %941 = vmatpush1.msra.mxu0 0.0
    %942 = vmatprep.subr.mxu0 0.0
    %943 = vmatpush1.msra.mxu0 0.0
    %944 = vmatprep.subr.mxu0 0.0
    %945 = vmatpush1.msra.mxu0 0.0
    %946 = vmatprep.subr.mxu0 0.0
    %947 = vmatpush1.msra.mxu0 0.0
    %948 = vmatprep.subr.mxu0 0.0
    %949 = vmatpush1.msra.mxu0 0.0
    %950 = vmatprep.subr.mxu0 0.0
    %951 = vmatpush1.msra.mxu0 0.0
    %952 = vmatprep.subr.mxu0 0.0
    %953 = vmatpush1.msra.mxu0 0.0
    %954 = vmatprep.subr.mxu0 0.0
    %955 = vmatpush1.msra.mxu0 0.0
    %956 = vmatprep.subr.mxu0 0.0
    %957 = vmatpush1.msra.mxu0 0.0
    %958 = vmatprep.subr.mxu0 0.0
    %959 = vmatpush1.msra.mxu0 0.0
    %960 = vmatprep.subr.mxu0 0.0
    %961 = vmatpush1.msra.mxu0 0.0
    %962 = vmatprep.subr.mxu0 0.0
    %963 = vmatpush1.msra.mxu0 0.0
    %964 = vmatprep.subr.mxu0 0.0
    %965 = vmatpush1.msra.mxu0 0.0
    %966 = vmatprep.subr.mxu0 0.0
    %967 = vmatpush1.msra.mxu0 0.0
    %968 = vmatprep.subr.mxu0 0.0
    %969 = vmatpush1.msra.mxu0 0.0
    %970 = vmatprep.subr.mxu0 0.0
    %971 = vmatpush1.msra.mxu0 0.0
    %972 = vmatprep.subr.mxu0 0.0
    %973 = vmatpush1.msra.mxu0 0.0
    %974 = vmatprep.subr.mxu0 0.0
    %975 = vmatpush1.msra.mxu0 0.0
    %976 = vmatprep.subr.mxu0 0.0
    %977 = vmatpush1.msra.mxu0 0.0
    %978 = vmatprep.subr.mxu0 0.0
    %979 = vmatpush1.msra.mxu0 0.0
    %980 = vmatprep.subr.mxu0 0.0
    %981 = vmatpush1.msra.mxu0 0.0
    %982 = vmatprep.subr.mxu0 0.0
    %983 = vmatpush1.msra.mxu0 0.0
    %984 = vmatprep.subr.mxu0 0.0
    %985 = vmatpush1.msra.mxu0 0.0
    %986 = vmatprep.subr.mxu0 0.0
    %987 = vmatpush1.msra.mxu0 0.0
    %988 = vmatprep.subr.mxu0 0.0
    %989 = vmatpush1.msra.mxu0 0.0
    %990 = vmatprep.subr.mxu0 0.0
    %991 = vmatpush1.msra.mxu0 0.0
    %992 = vmatprep.subr.mxu0 0.0
    %993 = vmatpush1.msra.mxu0 0.0
    %994 = vmatprep.subr.mxu0 0.0
    %995 = vmatpush1.msra.mxu0 0.0
    %996 = vmatprep.subr.mxu0 0.0
    %997 = vmatpush1.msra.mxu0 0.0
    %998 = vmatprep.mubr.f32.mxu0 0.0
    %999 = vmatmul.mubr.f32.gmra.mrb[0].mxu0 %v932
    %v1000 = vpop.f32.mrb[0].mxu0
    %v1001 = vadd.f32 0.0, %v1000
    %v1002 = vpop.f32.mrb[0].mxu0
    %1003 = vdwg.mxu0
    %vm1004 = vcmp.gt.f32.partialorder %v1001, 0.5
    %v1005 = vsel %vm1004, 1, 0
    %1006 = vrot.lane.b32.xlu0 %v1005, 96
    %v1007 = vpop.permute.xlu0 %1006
    %vm1008 = vcmp.ne.s32.totalorder %v1007, 0
    %vm1009 = vmand %vm1004, %vm1008
    %v1011 = vrot.slane %v1001, 7
    %v1013 = vsel %vm1009, %v1011, -1.0
    %1014 = vrot.lane.b32.xlu0 %v1011, 96
    %v1015 = vpop.permute.xlu0 %1014
    %v1017 = vsel %vm1009, %v1015, -1.0
    %v1019 = vrot.slane %v1013, 1
    %v1021 = vsel %vm921, %v1019, %v1017
    %v1022 = vcvt.f32.s32.to.zero.pseudo %v1021
    %vm1023 = vcmask 254976
    %1024 = vst.msk [vmem:[#allocation8] sm:$0x3] %vm1023, %v1022
    // Predicated region
    $region26: #{encoder_block.1} parent=1 // pred_check
      _
    $region27: #{encoder_block.1} parent=1 // pred_check_branch
      %1026 = sbr.rel (0) target = $region29
    $region28: #{encoder_block.1} parent=1 // pred_region
      %s1028 = ssub.s32 128, 128
      %1029 = vsyncadd [#allocation4], %s1028
      %s1031 = sshll.u32 [#allocation7], 4
      %s1032 = int_to_ptr.vmem [resolvable:$true] %s1031
      %1034 = dma.vmem_to_hbm [thread:$0]  %s1032, 128, %s4, [#allocation4]
    $region29: #{encoder_block.1} parent=1 // pred_fallthru
      _
    // Predicated region
    $region30: #{encoder_block.1} parent=1 // pred_check
      _
    $region31: #{encoder_block.1} parent=1 // pred_check_branch
      %1036 = sbr.rel (0) target = $region33
    $region32: #{encoder_block.1} parent=1 // pred_region
      %s1038 = ssub.s32 32, 32
      %1039 = vsyncadd [#allocation9], %s1038
      %s1041 = sshll.u32 [#allocation8], 4
      %s1042 = int_to_ptr.vmem [resolvable:$true] %s1041
      %1044 = dma.vmem_to_hbm [thread:$0]  %s1042, 32, %s5, [#allocation9]
    $region33: #{encoder_block.1} parent=1 // pred_fallthru
      _
    // Predicated region
    $region34: #{encoder_block.1} parent=1 // pred_check
      _
    $region35: #{encoder_block.1} parent=1 // pred_check_branch
      %1046 = sbr.rel (0) target = $region37
    $region36: #{encoder_block.1} parent=1 // pred_region
      _
    $region37: #{encoder_block.1} parent=1 // pred_fallthru
      _
    // Predicated region
    $region38: #{encoder_block.1} parent=1 // pred_check
      _
    $region39: #{encoder_block.1} parent=1 // pred_check_branch
      %1048 = sbr.rel (0) target = $region41
    $region40: #{encoder_block.1} parent=1 // pred_region
      _
    $region41: #{encoder_block.1} parent=1 // pred_fallthru
      _
    // Predicated region
    $region42: #{encoder_block.1} parent=1 // pred_check
      _
    $region43: #{encoder_block.1} parent=1 // pred_check_branch
      %1050 = sbr.rel (0) target = $region45
    $region44: #{encoder_block.1} parent=1 // pred_region
      %1051 = dma.done [#allocation4], 128
    $region45: #{encoder_block.1} parent=1 // pred_fallthru
      _
    // Predicated region
    $region46: #{encoder_block.1} parent=1 // pred_check
      _
    $region47: #{encoder_block.1} parent=1 // pred_check_branch
      %1053 = sbr.rel (0) target = $region49
    $region48: #{encoder_block.1} parent=1 // pred_region
      %1054 = dma.done [#allocation9], 32
    $region49: #{encoder_block.1} parent=1 // pred_fallthru
      _
    // Predicated region
    $region50: #{encoder_block.1} parent=1 // pred_check
      _
    $region51: #{encoder_block.1} parent=1 // pred_check_branch
      %1056 = sbr.rel (0) target = $region53
    $region52: #{encoder_block.1} parent=1 // pred_region
      _
    $region53: #{encoder_block.1} parent=1 // pred_fallthru
      _
    // Predicated region
    $region54: #{encoder_block.1} parent=1 // pred_check
      _
    $region55: #{encoder_block.1} parent=1 // pred_check_branch
      %1058 = sbr.rel (0) target = $region57
    $region56: #{encoder_block.1} parent=1 // pred_region
      _
    $region57: #{encoder_block.1} parent=1 // pred_fallthru
      _
    %1059 = vsyncpa [#allocation3], 1
    %1060 = vsyncpa [#allocation6], 1
    %1061 = vsyncpa [#allocation4], 1
    %1062 = vsyncpa [#allocation9], 1

</llo_original>
